<compile_context>
chip_gen: v5e
topology: v5e:2x2
jax: 0.10.0
libtpu: 0.0.40
codegen_flags: <defaults>
</compile_context>

<pallas_src>
import functools

import jax
import jax.numpy as jnp
from jax.experimental import pallas as pl
from jax.experimental.pallas import tpu as pltpu


def _round_up(x, m):
    return ((x + m - 1) // m) * m


def _tile_and_pad(dim, preferred, align):
    """Pick a tile size (multiple of `align`) and a padded dim it divides."""
    if dim >= preferred:
        tile = preferred
    else:
        tile = _round_up(max(dim, 1), align)
    return tile, _round_up(dim, tile)


# ---------------------------------------------------------------------------
# Kernel 1: HungarianMatcher_Crowd cost matrix, emitted transposed.
#   C[b, n, q] = cost_point * ||pred_points[b,q] - tgt_points[b,n]||_2
#              + cost_class * (-softmax(pred_logits)[b, q, tgt_labels[b,n]])
#   Padded query columns (q >= Q) are set to +inf (edge tiles only).
# ---------------------------------------------------------------------------
def _cost_kernel(logits_ref, pts_ref, tgt_ref, labels_ref, cost_ref, *,
                 w_class, q_total, tq):
    lg = logits_ref[...].astype(jnp.float32)     # [C1, TQ] class on sublanes
    pts = pts_ref[...].astype(jnp.float32)       # [2, TQ]  already * cost_point
    tgt = tgt_ref[...].astype(jnp.float32)       # [TN, 2]  already * cost_point
    labels = labels_ref[...]                     # [TN, 1]  int32, -1 = padding
    n_cls = lg.shape[0]

    # softmax over the tiny class (sublane) axis; fold -cost_class into prob
    # once per tile so the TNxTQ work below has no per-element weight multiply.
    m = jnp.max(lg, axis=0, keepdims=True)                      # [1, TQ]
    e = jnp.exp(lg - m)                                         # [C1, TQ]
    neg_wprob = e * ((-w_class) / jnp.sum(e, axis=0, keepdims=True))

    # class cost: compare+select chain (2 VALU ops/class/element).
    cost = jnp.zeros(cost_ref.shape, jnp.float32)               # [TN, TQ]
    for c in range(n_cls):
        cost = jnp.where(labels == c, neg_wprob[c:c + 1, :], cost)

    # pairwise Euclidean distance (weight already folded into the coords).
    dx = tgt[:, 0:1] - pts[0:1, :]                              # [TN, TQ]
    dy = tgt[:, 1:2] - pts[1:2, :]
    cost = cost + jnp.sqrt(dx * dx + dy * dy)

    cost_ref[...] = cost

    # Mask padded query columns to +inf so the matcher never selects padding.
    # Only the edge tile pays the extra compare/select + second store.
    qi = pl.program_id(2)

    @pl.when((qi + 1) * tq > q_total)
    def _():
        q_idx = jax.lax.broadcasted_iota(jnp.int32, cost.shape, 1) + qi * tq
        cost_ref[...] = jnp.where(q_idx < q_total, cost, jnp.float32(jnp.inf))


def cost_matrix_pallas(pred_logits, pred_points, tgt_points, tgt_labels,
                       cost_class=1.0, cost_point=0.05):
    """Returns the padded transposed cost matrix [B, N_pad, Q_pad] (f32)."""
    B, Q, C1 = pred_logits.shape
    N = tgt_points.shape[1]

    TQ, Q_pad = _tile_and_pad(Q, 1024, 128)   # queries lane-dense
    TN, N_pad = _tile_and_pad(N, 512, 8)      # targets on sublanes

    # Native-dtype pads/transposes (cast to f32 happens inside the kernel).
    logits_t = jnp.swapaxes(
        jnp.pad(pred_logits, ((0, 0), (0, Q_pad - Q), (0, 0))), 1, 2)   # [B,C1,Qp]
    pts_t = jnp.swapaxes(
        jnp.pad(pred_points * cost_point, ((0, 0), (0, Q_pad - Q), (0, 0))),
        1, 2)                                                           # [B,2,Qp]
    tgt_p = jnp.pad(tgt_points * cost_point,
                    ((0, 0), (0, N_pad - N), (0, 0)))                   # [B,Np,2]
    labels_p = jnp.pad(tgt_labels.astype(jnp.int32),
                       ((0, 0), (0, N_pad - N)),
                       constant_values=-1)[..., None]                   # [B,Np,1]

    # TODO(synk): emit bf16 cost on v5e/v6e (HBM-store bound) once argmin
    #             tie-breaking vs the f32 path has been validated.
    grid = (B, N_pad // TN, Q_pad // TQ)
    cost = pl.pallas_call(
        functools.partial(_cost_kernel, w_class=float(cost_class),
                          q_total=Q, tq=TQ),
        out_shape=jax.ShapeDtypeStruct((B, N_pad, Q_pad), jnp.float32),
        grid=grid,
        in_specs=[
            pl.BlockSpec((None, C1, TQ), lambda b, ni, qi: (b, 0, qi)),
            pl.BlockSpec((None, 2, TQ), lambda b, ni, qi: (b, 0, qi)),
            pl.BlockSpec((None, TN, 2), lambda b, ni, qi: (b, ni, 0)),
            pl.BlockSpec((None, TN, 1), lambda b, ni, qi: (b, ni, 0)),
        ],
        out_specs=pl.BlockSpec((None, TN, TQ), lambda b, ni, qi: (b, ni, qi)),
        compiler_params=pltpu.CompilerParams(
            dimension_semantics=("parallel", "parallel", "parallel"),
            vmem_limit_bytes=32 * 1024 * 1024),
    )(logits_t, pts_t, tgt_p, labels_p)
    return cost


# ---------------------------------------------------------------------------
# Kernel 2: greedy per-target matcher, whole per-batch cost block in VMEM.
# TODO(synk): exact Hungarian assignment (scipy.linear_sum_assignment) has no
#             Pallas/JAX equivalent; greedy per-target argmin is used instead.
# TODO(synk): for very large Q*N (block > ~24 MiB) row-tile the cost block or
#             use bf16 on v7x (64 MiB physical VMEM).
# ---------------------------------------------------------------------------
def _greedy_match_kernel(cost_ref, src_ref, taken, *, n_real):
    # cost_ref: [N_pad, Q_pad] f32 (padded q columns already +inf)
    # src_ref : [1, N_pad] int32 output (matched query per target)
    # taken   : [1, Q_pad] f32 scratch (1.0 = query already assigned)
    taken[...] = jnp.zeros_like(taken)
    src_ref[...] = jnp.zeros_like(src_ref)
    q_iota = jax.lax.broadcasted_iota(jnp.int32, taken.shape, 1)    # [1, Q_pad]
    n_iota = jax.lax.broadcasted_iota(jnp.int32, src_ref.shape, 1)  # [1, N_pad]

    @pl.loop(0, n_real)
    def _(n):
        row = cost_ref[pl.ds(n, 1), :]                              # [1, Q_pad]
        row = jnp.where(taken[...] > 0.0, jnp.float32(jnp.inf), row)
        mval = jnp.min(row)
        # first-occurrence argmin via min-of-indices (safe Mosaic lowering).
        cand = jnp.where(row == mval, q_iota, jnp.int32(2 ** 30))
        q = jnp.min(cand)
        taken[...] = jnp.where(q_iota == q, jnp.float32(1.0), taken[...])
        src_ref[...] = jnp.where(n_iota == n, q, src_ref[...])


def greedy_match_pallas(cost_pad, n_real):
    B, N_pad, Q_pad = cost_pad.shape
    src = pl.pallas_call(
        functools.partial(_greedy_match_kernel, n_real=n_real),
        out_shape=jax.ShapeDtypeStruct((B, 1, N_pad), jnp.int32),
        grid=(B,),
        in_specs=[pl.BlockSpec((None, N_pad, Q_pad), lambda b: (b, 0, 0))],
        out_specs=pl.BlockSpec((None, 1, N_pad), lambda b: (b, 0, 0)),
        scratch_shapes=[pltpu.VMEM((1, Q_pad), jnp.float32)],
        compiler_params=pltpu.CompilerParams(
            dimension_semantics=("parallel",),
            vmem_limit_bytes=64 * 1024 * 1024),
    )(cost_pad)
    return src[:, 0, :n_real]                      # [B, N]


# ---------------------------------------------------------------------------
# Kernel 3: losses, (B, Q) flattened into one lane axis, 1-D accumulator grid.
#   loss_ce     = weighted-mean cross entropy over all (b, q) positions
#   loss_points = sum over matched positions of (pred - tgt)^2 / num_points
# ---------------------------------------------------------------------------
def _loss_kernel(logits_ref, tclass_ref, pred_ref, mtgt_ref, mmask_ref,
                 weight_ref, npts_ref, ce_ref, pts_ref,
                 num_acc, den_acc, sq_acc):
    i = pl.program_id(0)

    @pl.when(i == 0)
    def _():
        num_acc[...] = jnp.zeros_like(num_acc)
        den_acc[...] = jnp.zeros_like(den_acc)
        sq_acc[...] = jnp.zeros_like(sq_acc)

    lg = logits_ref[...].astype(jnp.float32)     # [C1, TQ] class on sublanes
    tclass = tclass_ref[...]                     # [1, TQ]  int32 (-1 = padding)
    n_cls = lg.shape[0]

    # log-sum-exp over the shallow class (sublane) axis; lanes stay dense.
    m = jnp.max(lg, axis=0, keepdims=True)                            # [1, TQ]
    lse = m + jnp.log(jnp.sum(jnp.exp(lg - m), axis=0, keepdims=True))

    sel_logit = jnp.zeros_like(lse)
    w_bq = jnp.zeros_like(lse)
    for c in range(n_cls):
        hit = tclass == c                                              # [1, TQ]
        sel_logit = jnp.where(hit, lg[c:c + 1, :], sel_logit)
        w_bq = jnp.where(hit, weight_ref[c], w_bq)
    nll = lse - sel_logit                                              # [1, TQ]

    # Padded positions (tclass == -1) have w_bq == 0 -> contribute nothing.
    # Elementwise accumulation only; cross-lane sums happen at finalize.
    num_acc[...] += w_bq * nll
    den_acc[...] += w_bq

    # matched-point squared error; mask comes from the actual matched indices.
    mmask = mmask_ref[...].astype(jnp.float32)                         # [1, TQ]
    diff = (pred_ref[...].astype(jnp.float32)
            - mtgt_ref[...].astype(jnp.float32))                       # [2, TQ]
    sq_acc[...] += diff * diff * mmask

    @pl.when(i == pl.num_programs(0) - 1)
    def _():
        ce_ref[...] = (jnp.sum(num_acc[...], keepdims=True)
                       / jnp.sum(den_acc[...], keepdims=True))
        pts_ref[...] = jnp.sum(sq_acc[...], keepdims=True) / npts_ref[0]


def losses_pallas(pred_logits, target_classes, empty_weight, pred_points,
                  matched_tgt_pts, matched_mask, num_points):
    B, Q, C1 = pred_logits.shape
    L = B * Q
    TQ, L_pad = _tile_and_pad(L, 2048, 128)   # (B*Q) lane-dense, 1-D grid
    pad = L_pad - L

    # class / coord axes on sublanes, flattened (b, q) on lanes; native dtype.
    logits_f = jnp.pad(jnp.transpose(pred_logits, (2, 0, 1)).reshape(C1, L),
                       ((0, 0), (0, pad)))
    tclass_f = jnp.pad(target_classes.reshape(1, L), ((0, 0), (0, pad)),
                       constant_values=-1)
    pred_f = jnp.pad(jnp.transpose(pred_points, (2, 0, 1)).reshape(2, L),
                     ((0, 0), (0, pad)))
    mtgt_f = jnp.pad(jnp.transpose(matched_tgt_pts, (2, 0, 1)).reshape(2, L),
                     ((0, 0), (0, pad)))
    mmask_f = jnp.pad(matched_mask.reshape(1, L), ((0, 0), (0, pad)))

    smem = pl.BlockSpec(memory_space=pltpu.MemorySpace.SMEM)
    grid = (L_pad // TQ,)
    loss_ce, loss_pts = pl.pallas_call(
        _loss_kernel,
        out_shape=(jax.ShapeDtypeStruct((1, 1), jnp.float32),
                   jax.ShapeDtypeStruct((1, 1), jnp.float32)),
        grid=grid,
        in_specs=[
            pl.BlockSpec((C1, TQ), lambda i: (0, i)),
            pl.BlockSpec((1, TQ), lambda i: (0, i)),
            pl.BlockSpec((2, TQ), lambda i: (0, i)),
            pl.BlockSpec((2, TQ), lambda i: (0, i)),
            pl.BlockSpec((1, TQ), lambda i: (0, i)),
            smem,   # empty_weight (C1,) f32
            smem,   # num_points  (1,)  f32
        ],
        out_specs=(pl.BlockSpec((1, 1), lambda i: (0, 0)),
                   pl.BlockSpec((1, 1), lambda i: (0, 0))),
        scratch_shapes=[pltpu.VMEM((1, TQ), jnp.float32),
                        pltpu.VMEM((1, TQ), jnp.float32),
                        pltpu.VMEM((2, TQ), jnp.float32)],
        compiler_params=pltpu.CompilerParams(
            dimension_semantics=("arbitrary",),
            vmem_limit_bytes=32 * 1024 * 1024),
    )(logits_f, tclass_f, pred_f, mtgt_f, mmask_f, empty_weight, num_points)
    return loss_ce[0, 0], loss_pts[0, 0]


# ---------------------------------------------------------------------------
# SetCriterion_Crowd forward pass
# ---------------------------------------------------------------------------
class SetCriterionCrowdPallas:
    def __init__(self, num_classes, loss_cls, loss_points, eos_coef,
                 cost_class=1.0, cost_point=0.05):
        self.num_classes = num_classes
        self.weight_dict = {'loss_ce': float(loss_cls),
                            'loss_points': float(loss_points)}
        # empty_weight: ones(num_classes + 1); no-object class (0) = eos_coef
        self.empty_weight = jnp.ones((num_classes + 1,),
                                     jnp.float32).at[0].set(eos_coef)
        self.cost_class = cost_class
        self.cost_point = cost_point

    def __call__(self, outputs, targets):
        pred_logits = outputs['pred_logits']          # [B, Q, C+1]
        pred_points = outputs['pred_points']          # [B, Q, 2]
        tgt_points = targets['points']                # [B, N, 2]
        tgt_labels = targets['labels']                # [B, N] int32
        B, Q, _ = pred_logits.shape
        N = tgt_points.shape[1]

        # ---- matcher: cost matrix + greedy assignment, both in Pallas ----
        # cost is [B, N_pad, Q_pad]: padded query columns are +inf, so no
        # post-slice / transpose is needed before matching.
        cost = cost_matrix_pallas(pred_logits, pred_points, tgt_points,
                                  tgt_labels, self.cost_class, self.cost_point)
        # TODO(synk): if N > Q the greedy matcher degenerates (all queries
        #             taken) — add an explicit guard for that configuration.
        src_idx = greedy_match_pallas(cost, N)        # [B, N]
        indices = [(src_idx[b], jnp.arange(N, dtype=jnp.int32))
                   for b in range(B)]

        # ---- scatter matched targets into per-query buffers (glue) ----
        b_idx = jnp.arange(B)[:, None]
        target_classes = (jnp.zeros((B, Q), jnp.int32)
                          .at[b_idx, src_idx].set(tgt_labels.astype(jnp.int32)))
        matched_tgt_pts = (jnp.zeros((B, Q, 2), jnp.float32)
                           .at[b_idx, src_idx].set(tgt_points.astype(jnp.float32)))
        matched_mask = (jnp.zeros((B, Q), jnp.float32)
                        .at[b_idx, src_idx].set(1.0))

        # num_points = total number of target labels, clamped to >= 1
        # TODO(synk): if targets are padded (variable crowd counts), replace
        #             B*N with the sum of real per-image target lengths.
        num_points = jnp.maximum(jnp.float32(B * N), 1.0).reshape(1)

        # ---- losses in Pallas (flattened 1-D accumulator grid) ----
        loss_ce, loss_pts = losses_pallas(pred_logits, target_classes,
                                          self.empty_weight, pred_points,
                                          matched_tgt_pts, matched_mask,
                                          num_points)
        losses = [loss_ce * self.weight_dict['loss_ce'],
                  loss_pts * self.weight_dict['loss_points']]
        return losses, indices


if __name__ == "__main__":
    key = jax.random.PRNGKey(0)
    k1, k2, k3 = jax.random.split(key, 3)

    B, Q, N, num_classes = 2, 8, 4, 1
    pred_logits = jax.random.normal(k1, (B, Q, num_classes + 1), jnp.float32)
    pred_points = jax.random.uniform(k2, (B, Q, 2), jnp.float32) * 16.0
    tgt_points = jax.random.uniform(k3, (B, N, 2), jnp.float32) * 16.0
    tgt_labels = jnp.ones((B, N), jnp.int32)   # crowd class = 1, no-object = 0

    criterion = SetCriterionCrowdPallas(num_classes, loss_cls=1.0,
                                        loss_points=0.0002, eos_coef=0.5)
    losses, indices = criterion(
        {'pred_logits': pred_logits, 'pred_points': pred_points},
        {'points': tgt_points, 'labels': tgt_labels})

    losses = [jax.block_until_ready(l) for l in losses]
    _ = [jax.block_until_ready(i[0]) for i in indices]
    print("KERNEL_OK")
</pallas_src>

<mosaic_0001>
module attributes {stable_mosaic.version = 11 : i64} {
  func.func @_cost_kernel(%arg0: i32, %arg1: i32, %arg2: i32, %arg3: memref<1x2x128xf32, #tpu.memory_space<vmem>>, %arg4: memref<1x2x128xf32, #tpu.memory_space<vmem>>, %arg5: memref<1x8x2xf32, #tpu.memory_space<vmem>>, %arg6: memref<1x8x1xi32, #tpu.memory_space<vmem>>, %arg7: memref<1x8x128xf32, #tpu.memory_space<vmem>>) attributes {dimension_semantics = [#tpu.dimension_semantics<parallel>, #tpu.dimension_semantics<parallel>, #tpu.dimension_semantics<parallel>], iteration_bounds = array<i64: 2, 1, 1>, scalar_prefetch = 0 : i64, scratch_operands = 0 : i64, tpu.core_type = #tpu.core_type<tc>, window_params = [{transform_indices = @transform_0, window_bounds = array<i64: 1, 2, 128>}, {transform_indices = @transform_1, window_bounds = array<i64: 1, 2, 128>}, {transform_indices = @transform_2, window_bounds = array<i64: 1, 8, 2>}, {transform_indices = @transform_3, window_bounds = array<i64: 1, 8, 1>}, {transform_indices = @transform_4, window_bounds = array<i64: 1, 8, 128>}]} {
    %c0 = arith.constant 0 : index
    %c0_0 = arith.constant 0 : index
    %c0_1 = arith.constant 0 : index
    %0 = vector.load %arg3[%c0, %c0_0, %c0_1] : memref<1x2x128xf32, #tpu.memory_space<vmem>>, vector<1x2x128xf32>
    %1 = vector.shape_cast %0 : vector<1x2x128xf32> to vector<2x128xf32>
    %c0_2 = arith.constant 0 : index
    %c0_3 = arith.constant 0 : index
    %c0_4 = arith.constant 0 : index
    %2 = vector.load %arg4[%c0_2, %c0_3, %c0_4] : memref<1x2x128xf32, #tpu.memory_space<vmem>>, vector<1x2x128xf32>
    %3 = vector.shape_cast %2 : vector<1x2x128xf32> to vector<2x128xf32>
    %c0_5 = arith.constant 0 : index
    %c0_6 = arith.constant 0 : index
    %c0_7 = arith.constant 0 : index
    %4 = vector.load %arg5[%c0_5, %c0_6, %c0_7] : memref<1x8x2xf32, #tpu.memory_space<vmem>>, vector<1x8x2xf32>
    %5 = vector.shape_cast %4 : vector<1x8x2xf32> to vector<8x2xf32>
    %c0_8 = arith.constant 0 : index
    %c0_9 = arith.constant 0 : index
    %c0_10 = arith.constant 0 : index
    %6 = vector.load %arg6[%c0_8, %c0_9, %c0_10] : memref<1x8x1xi32, #tpu.memory_space<vmem>>, vector<1x8x1xi32>
    %7 = vector.shape_cast %6 : vector<1x8x1xi32> to vector<8x1xi32>
    %cst = arith.constant dense<0xFF800000> : vector<128xf32>
    %8 = vector.multi_reduction <maximumf>, %1, %cst [0] : vector<2x128xf32> to vector<128xf32>
    %9 = vector.shape_cast %8 : vector<128xf32> to vector<1x128xf32>
    %10 = vector.broadcast %9 : vector<1x128xf32> to vector<2x128xf32>
    %11 = arith.subf %1, %10 : vector<2x128xf32>
    %12 = math.exp %11 : vector<2x128xf32>
    %cst_11 = arith.constant dense<0.000000e+00> : vector<128xf32>
    %13 = vector.multi_reduction <add>, %12, %cst_11 [0] : vector<2x128xf32> to vector<128xf32>
    %14 = vector.shape_cast %13 : vector<128xf32> to vector<1x128xf32>
    %cst_12 = arith.constant -1.000000e+00 : f32
    %15 = vector.broadcast %cst_12 : f32 to vector<1x128xf32>
    %16 = arith.divf %15, %14 : vector<1x128xf32>
    %17 = vector.broadcast %16 : vector<1x128xf32> to vector<2x128xf32>
    %18 = arith.mulf %12, %17 : vector<2x128xf32>
    %cst_13 = arith.constant 0.000000e+00 : f32
    %19 = vector.broadcast %cst_13 : f32 to vector<8x128xf32>
    %c0_i32 = arith.constant 0 : i32
    %20 = vector.broadcast %c0_i32 : i32 to vector<8x1xi32>
    %21 = arith.cmpi eq, %7, %20 : vector<8x1xi32>
    %22 = vector.extract_strided_slice %18 {offsets = [0, 0], sizes = [1, 128], strides = [1, 1]} : vector<2x128xf32> to vector<1x128xf32>
    %23 = vector.shape_cast %21 : vector<8x1xi1> to vector<8x1xi1>
    %24 = vector.broadcast %23 : vector<8x1xi1> to vector<8x128xi1>
    %25 = vector.shape_cast %22 : vector<1x128xf32> to vector<1x128xf32>
    %26 = vector.broadcast %25 : vector<1x128xf32> to vector<8x128xf32>
    %27 = arith.select %24, %26, %19 : vector<8x128xi1>, vector<8x128xf32>
    %c1_i32 = arith.constant 1 : i32
    %28 = vector.broadcast %c1_i32 : i32 to vector<8x1xi32>
    %29 = arith.cmpi eq, %7, %28 : vector<8x1xi32>
    %30 = vector.extract_strided_slice %18 {offsets = [1, 0], sizes = [1, 128], strides = [1, 1]} : vector<2x128xf32> to vector<1x128xf32>
    %31 = vector.shape_cast %29 : vector<8x1xi1> to vector<8x1xi1>
    %32 = vector.broadcast %31 : vector<8x1xi1> to vector<8x128xi1>
    %33 = vector.shape_cast %30 : vector<1x128xf32> to vector<1x128xf32>
    %34 = vector.broadcast %33 : vector<1x128xf32> to vector<8x128xf32>
    %35 = arith.select %32, %34, %27 : vector<8x128xi1>, vector<8x128xf32>
    %36 = vector.extract_strided_slice %5 {offsets = [0, 0], sizes = [8, 1], strides = [1, 1]} : vector<8x2xf32> to vector<8x1xf32>
    %37 = vector.extract_strided_slice %3 {offsets = [0, 0], sizes = [1, 128], strides = [1, 1]} : vector<2x128xf32> to vector<1x128xf32>
    %38 = vector.broadcast %36 : vector<8x1xf32> to vector<8x128xf32>
    %39 = vector.broadcast %37 : vector<1x128xf32> to vector<8x128xf32>
    %40 = arith.subf %38, %39 : vector<8x128xf32>
    %41 = vector.extract_strided_slice %5 {offsets = [0, 1], sizes = [8, 1], strides = [1, 1]} : vector<8x2xf32> to vector<8x1xf32>
    %42 = vector.extract_strided_slice %3 {offsets = [1, 0], sizes = [1, 128], strides = [1, 1]} : vector<2x128xf32> to vector<1x128xf32>
    %43 = vector.broadcast %41 : vector<8x1xf32> to vector<8x128xf32>
    %44 = vector.broadcast %42 : vector<1x128xf32> to vector<8x128xf32>
    %45 = arith.subf %43, %44 : vector<8x128xf32>
    %46 = arith.mulf %40, %40 : vector<8x128xf32>
    %47 = arith.mulf %45, %45 : vector<8x128xf32>
    %48 = arith.addf %46, %47 : vector<8x128xf32>
    %49 = math.sqrt %48 : vector<8x128xf32>
    %50 = arith.addf %35, %49 : vector<8x128xf32>
    %c0_14 = arith.constant 0 : index
    %c0_15 = arith.constant 0 : index
    %c0_16 = arith.constant 0 : index
    %51 = vector.load %arg7[%c0_14, %c0_15, %c0_16] : memref<1x8x128xf32, #tpu.memory_space<vmem>>, vector<1x8x128xf32>
    %52 = vector.shape_cast %51 : vector<1x8x128xf32> to vector<8x128xf32>
    %53 = vector.shape_cast %50 : vector<8x128xf32> to vector<1x8x128xf32>
    tpu.vector_store %arg7[%c0_14, %c0_15, %c0_16], %53 {strides = array<i32>} : memref<1x8x128xf32, #tpu.memory_space<vmem>>, vector<1x8x128xf32>,
    %c1_i32_17 = arith.constant 1 : i32
    %54 = arith.addi %arg2, %c1_i32_17 : i32
    %c128_i32 = arith.constant 128 : i32
    %55 = arith.muli %54, %c128_i32 : i32
    %c8_i32 = arith.constant 8 : i32
    %56 = arith.cmpi sgt, %55, %c8_i32 : i32
    %57 = arith.extui %56 : i1 to i32
    %c0_i32_18 = arith.constant 0 : i32
    %58 = arith.cmpi ne, %57, %c0_i32_18 : i32
    scf.if %58 {
      %59 = tpu.iota {dimensions = array<i32: 1>} : vector<8x128xi32>
      %c128_i32_19 = arith.constant 128 : i32
      %60 = arith.muli %arg2, %c128_i32_19 : i32
      %61 = vector.broadcast %60 : i32 to vector<8x128xi32>
      %62 = arith.addi %59, %61 : vector<8x128xi32>
      %c8_i32_20 = arith.constant 8 : i32
      %63 = vector.broadcast %c8_i32_20 : i32 to vector<8x128xi32>
      %64 = arith.cmpi slt, %62, %63 : vector<8x128xi32>
      %cst_21 = arith.constant 0x7F800000 : f32
      %65 = vector.broadcast %cst_21 : f32 to vector<8x128xf32>
      %66 = arith.select %64, %50, %65 : vector<8x128xi1>, vector<8x128xf32>
      %c0_22 = arith.constant 0 : index
      %c0_23 = arith.constant 0 : index
      %c0_24 = arith.constant 0 : index
      %67 = vector.load %arg7[%c0_22, %c0_23, %c0_24] : memref<1x8x128xf32, #tpu.memory_space<vmem>>, vector<1x8x128xf32>
      %68 = vector.shape_cast %67 : vector<1x8x128xf32> to vector<8x128xf32>
      %69 = vector.shape_cast %66 : vector<8x128xf32> to vector<1x8x128xf32>
      tpu.vector_store %arg7[%c0_22, %c0_23, %c0_24], %69 {strides = array<i32>} : memref<1x8x128xf32, #tpu.memory_space<vmem>>, vector<1x8x128xf32>,
    } else {
    }
    return
  }
  func.func @transform_0(%arg0: i32, %arg1: i32, %arg2: i32) -> (i32, i32, i32) {
    %c0_i32 = arith.constant 0 : i32
    %c0_i32_0 = arith.constant 0 : i32
    return %arg0, %c0_i32, %arg2 : i32, i32, i32
  }
  func.func @transform_1(%arg0: i32, %arg1: i32, %arg2: i32) -> (i32, i32, i32) {
    %c0_i32 = arith.constant 0 : i32
    %c0_i32_0 = arith.constant 0 : i32
    return %arg0, %c0_i32, %arg2 : i32, i32, i32
  }
  func.func @transform_2(%arg0: i32, %arg1: i32, %arg2: i32) -> (i32, i32, i32) {
    %c0_i32 = arith.constant 0 : i32
    %c0_i32_0 = arith.constant 0 : i32
    return %arg0, %arg1, %c0_i32 : i32, i32, i32
  }
  func.func @transform_3(%arg0: i32, %arg1: i32, %arg2: i32) -> (i32, i32, i32) {
    %c0_i32 = arith.constant 0 : i32
    %c0_i32_0 = arith.constant 0 : i32
    return %arg0, %arg1, %c0_i32 : i32, i32, i32
  }
  func.func @transform_4(%arg0: i32, %arg1: i32, %arg2: i32) -> (i32, i32, i32) {
    %c0_i32 = arith.constant 0 : i32
    return %arg0, %arg1, %arg2 : i32, i32, i32
  }
}

</mosaic_0001>

<llo_original>
// kernel: tpu_custom_call.1
$region0: #{tpu_custom_call.1}
  #allocation0 [shape = 'u32[]', space=smem, size = 0x4, offset = 0x4, fixed_abs, tag = 'smem constant byte address 0x4 - core index']
  #allocation1 [shape = 'u32[72,128]{1,0:T(1,128)}', space=vmem, size = 0x9000, scoped, tag = 'internal scratch']
  %s0 = inlined_call_operand.vmem [shape: f32[2,2,128], index: 0, kind: input, shape index: {}]
  %s1 = inlined_call_operand.vmem [shape: f32[2,2,128], index: 1, kind: input, shape index: {}]
  %s2 = inlined_call_operand.vmem [shape: f32[2,8,2], index: 2, kind: input, shape index: {}]
  %s3 = inlined_call_operand.vmem [shape: s32[2,8,1], index: 3, kind: input, shape index: {}]
  %s4 = inlined_call_operand.hbm [shape: f32[2,8,128], index: 4, kind: output, shape index: {}]
  %s5 = sld [smem:[#allocation0]]
  $region53: #{tpu_custom_call.1} parent=0
    _
  %s7 = ssub.s32 1, %s5
  %s8 = scalar_select 0, %s7, %s5
  $region1: #{tpu_custom_call.1} parent=0
    #allocation2 [shape = 'u8[8192]{0}', space=vmem, size = 0x2000, scoped, tag = 'output window, operand 0']
    #allocation3 [shape = 's32[2]{0}', space=sflag, size = 0x8, scoped, tag = 'scoped memory for tpu_custom_call.1']
    %9 = vsyncpa [#allocation3], 0
    %s10 = scalar_lea.sflag [#allocation3], 1
    %11 = vsyncpa %s10, 0
    loop: start=0, step=1, limit=4
    $region2: #{tpu_custom_call.1} parent=1 // loop_pre_header
      _
    $region3: #{tpu_custom_call.1} parent=1 // loop_header
      %s13 = sphi 0, %s17
      %p14 = scmp.ge.s32.totalorder %s13, 4
      %s20 = sphi 0, %s39
      %s21 = sphi 0, %s35
      %s22 = sphi 0, %s31
      %s23 = sphi 0, %s20
      %s24 = sphi 0, %s21
      %s25 = sphi 0, %s22
      %s26 = sphi 0, %s23
      %s27 = sphi 0, %s24
      %s28 = sphi 0, %s25
      %s44 = sphi 0, %s46
      %s47 = sphi 0, %s44
      %s48 = sphi 0, %s47
      %s64 = sphi 0, %s48
      %s72 = sphi 0, %s74
      %s75 = sphi 0, %s72
      %s76 = sphi 0, %s75
      %s92 = sphi 0, %s76
      %s100 = sphi 0, %s102
      %s103 = sphi 0, %s100
      %s104 = sphi 0, %s103
      %s120 = sphi 0, %s104
      %s128 = sphi 0, %s130
      %s131 = sphi 0, %s128
      %s132 = sphi 0, %s131
      %s148 = sphi 0, %s132
      %s158 = sphi 0, %s160
      %s161 = sphi 0, %s158
      %s162 = sphi 0, %s161
      %s178 = sphi 0, %s162
    $region4: #{tpu_custom_call.1} parent=1 // loop_header_branch
      %16 = sbr.rel (%p14) target = $region8
    $region5: #{tpu_custom_call.1} parent=1 // loop_body
      %s18 = ssub.s32 %s13, 1
      %s19 = ssub.s32 %s13, 2
      %s29 = sadd.s32 1, %s22
      %p30 = scmp.ge.s32.totalorder %s29, 1
      %s31 = scalar_select %p30, 0, %s29
      %s32 = sadd.s32 1, %s21
      %s33 = scalar_select %p30, %s32, %s21
      %p34 = scmp.ge.s32.totalorder %s33, 1
      %s35 = scalar_select %p34, 0, %s33
      %s36 = sadd.s32 1, %s20
      %s37 = scalar_select %p34, %s36, %s20
      %p38 = scmp.ge.s32.totalorder %s37, 2
      %s39 = scalar_select %p38, 0, %s37
      %s40 = ssub.s32 %s20, %s39
      %s41 = ssub.s32 %s22, %s31
      %s42 = sor.u32 %s40, %s41
      %p43 = scmp.eq.s32.totalorder %s42, 0
      %s45 = sadd.s32 %s44, 1
      %s46 = scalar_select %p43, %s44, %s45
      %p49 = pneg %p43
      %p50 = scmp.eq.s32.totalorder %s13, 1
      %p51 = por %p49, %p50
      %p52 = scmp.ne.s32.totalorder %s44, %s47
      %p53 = scmp.eq.s32.totalorder %s13, 0
      %p54 = por %p52, %p53
      %p55 = scmp.ne.s32.totalorder %s44, %s47
      %p56 = scmp.eq.s32.totalorder %s18, 1
      %p57 = por %p55, %p56
      %p58 = scmp.ne.s32.totalorder %s47, %s48
      %p59 = scmp.eq.s32.totalorder %s18, 0
      %p60 = por %p58, %p59
      %p61 = scmp.ne.s32.totalorder %s47, %s48
      %p62 = scmp.eq.s32.totalorder %s19, 1
      %p63 = por %p61, %p62
      %p65 = scmp.ne.s32.totalorder %s48, %s64
      %p66 = scmp.eq.s32.totalorder %s19, 0
      %p67 = por %p65, %p66
      %s68 = ssub.s32 %s20, %s39
      %s69 = ssub.s32 %s22, %s31
      %s70 = sor.u32 %s68, %s69
      %p71 = scmp.eq.s32.totalorder %s70, 0
      %s73 = sadd.s32 %s72, 1
      %s74 = scalar_select %p71, %s72, %s73
      %p77 = pneg %p71
      %p78 = scmp.eq.s32.totalorder %s13, 1
      %p79 = por %p77, %p78
      %p80 = scmp.ne.s32.totalorder %s72, %s75
      %p81 = scmp.eq.s32.totalorder %s13, 0
      %p82 = por %p80, %p81
      %p83 = scmp.ne.s32.totalorder %s72, %s75
      %p84 = scmp.eq.s32.totalorder %s18, 1
      %p85 = por %p83, %p84
      %p86 = scmp.ne.s32.totalorder %s75, %s76
      %p87 = scmp.eq.s32.totalorder %s18, 0
      %p88 = por %p86, %p87
      %p89 = scmp.ne.s32.totalorder %s75, %s76
      %p90 = scmp.eq.s32.totalorder %s19, 1
      %p91 = por %p89, %p90
      %p93 = scmp.ne.s32.totalorder %s76, %s92
      %p94 = scmp.eq.s32.totalorder %s19, 0
      %p95 = por %p93, %p94
      %s96 = ssub.s32 %s20, %s39
      %s97 = ssub.s32 %s21, %s35
      %s98 = sor.u32 %s96, %s97
      %p99 = scmp.eq.s32.totalorder %s98, 0
      %s101 = sadd.s32 %s100, 1
      %s102 = scalar_select %p99, %s100, %s101
      %p105 = pneg %p99
      %p106 = scmp.eq.s32.totalorder %s13, 1
      %p107 = por %p105, %p106
      %p108 = scmp.ne.s32.totalorder %s100, %s103
      %p109 = scmp.eq.s32.totalorder %s13, 0
      %p110 = por %p108, %p109
      %p111 = scmp.ne.s32.totalorder %s100, %s103
      %p112 = scmp.eq.s32.totalorder %s18, 1
      %p113 = por %p111, %p112
      %p114 = scmp.ne.s32.totalorder %s103, %s104
      %p115 = scmp.eq.s32.totalorder %s18, 0
      %p116 = por %p114, %p115
      %p117 = scmp.ne.s32.totalorder %s103, %s104
      %p118 = scmp.eq.s32.totalorder %s19, 1
      %p119 = por %p117, %p118
      %p121 = scmp.ne.s32.totalorder %s104, %s120
      %p122 = scmp.eq.s32.totalorder %s19, 0
      %p123 = por %p121, %p122
      %s124 = ssub.s32 %s20, %s39
      %s125 = ssub.s32 %s21, %s35
      %s126 = sor.u32 %s124, %s125
      %p127 = scmp.eq.s32.totalorder %s126, 0
      %s129 = sadd.s32 %s128, 1
      %s130 = scalar_select %p127, %s128, %s129
      %p133 = pneg %p127
      %p134 = scmp.eq.s32.totalorder %s13, 1
      %p135 = por %p133, %p134
      %p136 = scmp.ne.s32.totalorder %s128, %s131
      %p137 = scmp.eq.s32.totalorder %s13, 0
      %p138 = por %p136, %p137
      %p139 = scmp.ne.s32.totalorder %s128, %s131
      %p140 = scmp.eq.s32.totalorder %s18, 1
      %p141 = por %p139, %p140
      %p142 = scmp.ne.s32.totalorder %s131, %s132
      %p143 = scmp.eq.s32.totalorder %s18, 0
      %p144 = por %p142, %p143
      %p145 = scmp.ne.s32.totalorder %s131, %s132
      %p146 = scmp.eq.s32.totalorder %s19, 1
      %p147 = por %p145, %p146
      %p149 = scmp.ne.s32.totalorder %s132, %s148
      %p150 = scmp.eq.s32.totalorder %s19, 0
      %p151 = por %p149, %p150
      %s152 = ssub.s32 %s20, %s39
      %s153 = ssub.s32 %s21, %s35
      %s154 = sor.u32 %s152, %s153
      %s155 = ssub.s32 %s22, %s31
      %s156 = sor.u32 %s154, %s155
      %p157 = scmp.eq.s32.totalorder %s156, 0
      %s159 = sadd.s32 %s158, 1
      %s160 = scalar_select %p157, %s158, %s159
      %p163 = pneg %p157
      %p164 = scmp.eq.s32.totalorder %s13, 1
      %p165 = por %p163, %p164
      %p166 = scmp.ne.s32.totalorder %s158, %s161
      %p167 = scmp.eq.s32.totalorder %s13, 0
      %p168 = por %p166, %p167
      %p169 = scmp.ne.s32.totalorder %s158, %s161
      %p170 = scmp.eq.s32.totalorder %s18, 1
      %p171 = por %p169, %p170
      %p172 = scmp.ne.s32.totalorder %s161, %s162
      %p173 = scmp.eq.s32.totalorder %s18, 0
      %p174 = por %p172, %p173
      %p175 = scmp.ne.s32.totalorder %s161, %s162
      %p176 = scmp.eq.s32.totalorder %s19, 1
      %p177 = por %p175, %p176
      %p179 = scmp.ne.s32.totalorder %s162, %s178
      %p180 = scmp.eq.s32.totalorder %s19, 0
      %p181 = por %p179, %p180
      %p182 = scmp.le.s32.totalorder 1, %s13
      %p183 = scmp.lt.s32.totalorder %s13, 3
      %p184 = pnand %p182, %p183
      %p185 = pneg %p184
      // Predicated region
      $region9: #{tpu_custom_call.1} parent=5 // pred_check
        _
      $region10: #{tpu_custom_call.1} parent=5 // pred_check_branch
        %187 = sbr.rel (%p184) target = $region12
      $region11: #{tpu_custom_call.1} parent=5 // pred_region
        %s188 = ssub.s32 %s13, 1
      $region12: #{tpu_custom_call.1} parent=5 // pred_fallthru
        _
      %p189 = scmp.lt.s32.totalorder %s13, 2
      // Predicated region
      $region13: #{tpu_custom_call.1} parent=5 // pred_check
        %p190 = pneg %p189
      $region14: #{tpu_custom_call.1} parent=5 // pred_check_branch
        %192 = sbr.rel (%p190) target = $region16
      $region15: #{tpu_custom_call.1} parent=5 // pred_region
        // Predicated region
        $region17: #{tpu_custom_call.1} parent=15 // pred_check
          %p193 = pneg %p54
        $region18: #{tpu_custom_call.1} parent=15 // pred_check_branch
          %195 = sbr.rel (%p193) target = $region20
        $region19: #{tpu_custom_call.1} parent=15 // pred_region
          %p196 = scmp.lt.s32.totalorder %s20, 1
          %s197 = scalar_select %p196, %s20, 1
          %p198 = scmp.lt.s32.totalorder %s22, 0
          %s199 = scalar_select %p198, %s22, 0
          %s200 = sadd.s32 %s199, %s197
          %s201 = smul.addr %s200, 2
          %s202 = scalar_lea.vmem %s0, %s201
        $region20: #{tpu_custom_call.1} parent=15 // pred_fallthru
          _
        // Predicated region
        $region21: #{tpu_custom_call.1} parent=15 // pred_check
          %p203 = pneg %p82
        $region22: #{tpu_custom_call.1} parent=15 // pred_check_branch
          %205 = sbr.rel (%p203) target = $region24
        $region23: #{tpu_custom_call.1} parent=15 // pred_region
          %p206 = scmp.lt.s32.totalorder %s20, 1
          %s207 = scalar_select %p206, %s20, 1
          %p208 = scmp.lt.s32.totalorder %s22, 0
          %s209 = scalar_select %p208, %s22, 0
          %s210 = sadd.s32 %s209, %s207
          %s211 = smul.addr %s210, 2
          %s212 = scalar_lea.vmem %s1, %s211
        $region24: #{tpu_custom_call.1} parent=15 // pred_fallthru
          _
        // Predicated region
        $region25: #{tpu_custom_call.1} parent=15 // pred_check
          %p213 = pneg %p110
        $region26: #{tpu_custom_call.1} parent=15 // pred_check_branch
          %215 = sbr.rel (%p213) target = $region28
        $region27: #{tpu_custom_call.1} parent=15 // pred_region
          %p216 = scmp.lt.s32.totalorder %s20, 1
          %s217 = scalar_select %p216, %s20, 1
          %p218 = scmp.lt.s32.totalorder %s21, 0
          %s219 = scalar_select %p218, %s21, 0
          %s220 = sadd.s32 %s219, %s217
          %s221 = smul.addr %s220, 8
          %s222 = scalar_lea.vmem %s2, %s221
        $region28: #{tpu_custom_call.1} parent=15 // pred_fallthru
          _
        // Predicated region
        $region29: #{tpu_custom_call.1} parent=15 // pred_check
          %p223 = pneg %p138
        $region30: #{tpu_custom_call.1} parent=15 // pred_check_branch
          %225 = sbr.rel (%p223) target = $region32
        $region31: #{tpu_custom_call.1} parent=15 // pred_region
          %p226 = scmp.lt.s32.totalorder %s20, 1
          %s227 = scalar_select %p226, %s20, 1
          %p228 = scmp.lt.s32.totalorder %s21, 0
          %s229 = scalar_select %p228, %s21, 0
          %s230 = sadd.s32 %s229, %s227
          %s231 = smul.addr %s230, 8
          %s232 = scalar_lea.vmem %s3, %s231
        $region32: #{tpu_custom_call.1} parent=15 // pred_fallthru
          _
      $region16: #{tpu_custom_call.1} parent=5 // pred_fallthru
        _
      %p233 = scmp.le.s32.totalorder 1, %s13
      %p234 = scmp.lt.s32.totalorder %s13, 3
      %p235 = pnand %p233, %p234
      %p236 = pneg %p235
      // Predicated region
      $region33: #{tpu_custom_call.1} parent=5 // pred_check
        _
      $region34: #{tpu_custom_call.1} parent=5 // pred_check_branch
        %238 = sbr.rel (%p235) target = $region36
      $region35: #{tpu_custom_call.1} parent=5 // pred_region
        %s239 = ssub.s32 %s13, 1
        %p240 = scmp.lt.s32.totalorder %s23, 1
        %s241 = scalar_select %p240, %s23, 1
        %p242 = scmp.lt.s32.totalorder %s25, 0
        %s243 = scalar_select %p242, %s25, 0
        %s244 = sadd.s32 %s243, %s241
        %s245 = smul.addr %s244, 2
        %s246 = scalar_lea.vmem %s0, %s245
        %p247 = pneg %p60
        %p248 = pneg %p57
        %p249 = scmp.lt.s32.totalorder %s23, 1
        %s250 = scalar_select %p249, %s23, 1
        %p251 = scmp.lt.s32.totalorder %s25, 0
        %s252 = scalar_select %p251, %s25, 0
        %s253 = sadd.s32 %s252, %s250
        %s254 = smul.addr %s253, 2
        %s255 = scalar_lea.vmem %s1, %s254
        %p256 = pneg %p88
        %p257 = pneg %p85
        %p258 = scmp.lt.s32.totalorder %s23, 1
        %s259 = scalar_select %p258, %s23, 1
        %p260 = scmp.lt.s32.totalorder %s24, 0
        %s261 = scalar_select %p260, %s24, 0
        %s262 = sadd.s32 %s261, %s259
        %s263 = smul.addr %s262, 8
        %s264 = scalar_lea.vmem %s2, %s263
        %p265 = pneg %p116
        %p266 = pneg %p113
        %p267 = scmp.lt.s32.totalorder %s23, 1
        %s268 = scalar_select %p267, %s23, 1
        %p269 = scmp.lt.s32.totalorder %s24, 0
        %s270 = scalar_select %p269, %s24, 0
        %s271 = sadd.s32 %s270, %s268
        %s272 = smul.addr %s271, 8
        %s273 = scalar_lea.vmem %s3, %s272
        %p274 = pneg %p144
        %p275 = pneg %p141
        %p276 = pneg %p174
        %p277 = pneg %p171
        %s278 = sand.u32 %s161, 1
        %s279 = scalar_lea.sflag [#allocation3], %s278
        %s280 = sand.u32 %s161, 1
        %s281 = smul.addr %s280, 8
        %s282 = scalar_lea.vmem [#allocation2], %s281
        %p283 = scmp.lt.s32.totalorder %s23, 1
        %s284 = scalar_select %p283, %s23, 1
        %p285 = scmp.lt.s32.totalorder %s25, 0
        %s286 = scalar_select %p285, %s25, 0
        %s287 = sadd.s32 %s286, %s284
        %s288 = smul.addr %s287, 2
        %s289 = scalar_lea.vmem %s0, %s288
        %p290 = scmp.lt.s32.totalorder %s23, 1
        %s291 = scalar_select %p290, %s23, 1
        %p292 = scmp.lt.s32.totalorder %s25, 0
        %s293 = scalar_select %p292, %s25, 0
        %s294 = sadd.s32 %s293, %s291
        %s295 = smul.addr %s294, 2
        %s296 = scalar_lea.vmem %s1, %s295
        %p297 = scmp.lt.s32.totalorder %s23, 1
        %s298 = scalar_select %p297, %s23, 1
        %p299 = scmp.lt.s32.totalorder %s24, 0
        %s300 = scalar_select %p299, %s24, 0
        %s301 = sadd.s32 %s300, %s298
        %s302 = smul.addr %s301, 8
        %s303 = scalar_lea.vmem %s2, %s302
        %p304 = scmp.lt.s32.totalorder %s23, 1
        %s305 = scalar_select %p304, %s23, 1
        %p306 = scmp.lt.s32.totalorder %s24, 0
        %s307 = scalar_select %p306, %s24, 0
        %s308 = sadd.s32 %s307, %s305
        %s309 = smul.addr %s308, 8
        %s310 = scalar_lea.vmem %s3, %s309
        %v311 = vld [vmem:[%s289] sm:$0x3]
        %v312 = vld [vmem:[%s296] sm:$0x3]
        %v313 = vld [vmem:[%s303] sm:$0xff]
        %v314 = vld [vmem:[%s310] sm:$0xff]
        %vm315 = vcmask 1041408
        %v316 = vsel %vm315, %v311, -inf
        %v317 = vrot.slane %v316, 4
        %v318 = vmax.f32 %v316, %v317
        %v319 = vrot.slane %v318, 2
        %v320 = vmax.f32 %v318, %v319
        %v321 = vrot.slane %v320, 1
        %v322 = vmax.f32 %v320, %v321
        %v323 = vsub.f32 %v311, %v322
        %v324 = vmul.f32 %v323, 1.442695
        %v325 = vpow.pop %v324
        %v326 = vsel %vm315, %v325, 0.0
        %v327 = vrot.slane %v326, 4
        %v328 = vadd.f32 %v326, %v327
        %v329 = vrot.slane %v328, 2
        %v330 = vadd.f32 %v328, %v329
        %v331 = vrot.slane %v330, 1
        %v332 = vadd.f32 %v330, %v331
        %v333 = vrcp.pop %v332
        %v334 = vmul.f32 %v332, %v333
        %v335 = vsub.f32 1.0, %v334
        %v336 = vmul.f32 %v333, %v335
        %v337 = vadd.f32 %v333, %v336
        %vm338 = vweird.f32 %v332
        %vm339 = vweird.f32 %v333
        %vm340 = vmor %vm338, %vm339
        %v341 = vsel %vm340, %v333, %v337
        %v342 = vand.u32 2147483647, %v332
        %vm343 = vcmp.eq.f32.partialorder %v342, 8.507059e+37
        %v344 = vand.u32 %v332, 2147483648
        %v345 = vor.u32 1.1754944e-38, %v344
        %v346 = vsel %vm343, %v345, %v341
        %v347 = vmul.f32 -1.0, %v346
        %v348 = vmul.f32 %v325, %v347
        %vm349 = vcmp.eq.s32.totalorder %v314, 0
        %v350 = vsel %vm349, 1, 0
        %351 = vset.pattern.permute.xlu0 0
        %352 = vperm.xlu0 %351, %v350
        %v353 = vpop.permute.xlu0 %352
        %vm354 = vcmp.eq.s32.totalorder %v353, 1
        %v355 = vperm.slane %v348, 0
        %v356 = vsel %vm354, %v355, 0.0
        %vm357 = vcmp.eq.s32.totalorder %v314, 1
        %v358 = vsel %vm357, 1, 0
        %359 = vset.pattern.permute.xlu0 0
        %360 = vperm.xlu0 %359, %v358
        %v361 = vpop.permute.xlu0 %360
        %vm362 = vcmp.eq.s32.totalorder %v361, 1
        %v363 = vperm.slane %v348, 1
        %v364 = vsel %vm362, %v363, %v356
        %366 = vset.pattern.permute.xlu0 0
        %367 = vperm.xlu0 %366, %v313
        %v368 = vpop.permute.xlu0 %367
        %v370 = vperm.slane %v312, 0
        %v371 = vsub.f32 %v368, %v370
        %372 = vset.pattern.permute.xlu0 1
        %373 = vperm.xlu0 %372, %v313
        %v374 = vpop.permute.xlu0 %373
        %v376 = vperm.slane %v312, 1
        %v377 = vsub.f32 %v374, %v376
        %v378 = vmul.f32 %v371, %v371
        %v379 = vmul.f32 %v377, %v377
        %v380 = vadd.f32 %v378, %v379
        %v381 = vrsqrt.pop %v380
        %v382 = vmul.f32 %v381, %v380
        %v383 = vmul.f32 %v382, %v381
        %v384 = vmul.f32 0.5, %v383
        %v385 = vsub.f32 1.5, %v384
        %v386 = vmul.f32 %v381, %v385
        %v387 = vmul.f32 %v380, %v386
        %vm388 = vcmp.eq.f32.partialorder %v380, inf
        %v389 = vsel %vm388, %v380, %v387
        %vm390 = vcmp.eq.f32.partialorder %v380, 0.0
        %v391 = vand.u32 %v380, 2147483648
        %v392 = vsel %vm390, %v391, %v389
        %v393 = vadd.f32 %v364, %v392
        %394 = vst [vmem:[%s282] sm:$0xff] %v393
        %s395 = sadd.s32 %s25, 1
        %s396 = smul.u32 %s395, 128
        %p397 = scmp.gt.s32.totalorder %s396, 8
        // Predicated region
        $region37: #{tpu_custom_call.1} parent=35 // pred_check
          %p398 = pneg %p397
        $region38: #{tpu_custom_call.1} parent=35 // pred_check_branch
          %400 = sbr.rel (%p398) target = $region40
        $region39: #{tpu_custom_call.1} parent=35 // pred_region
          %v401 = vlaneseq
          %v402 = vand.u32 %v401, 127
          %s403 = smul.u32 %s25, 128
          %v404 = vstv %s403
          %v405 = vadd.s32 %v402, %v404
          %vm406 = vcmp.lt.s32.totalorder %v405, 8
          %v407 = vsel %vm406, %v393, inf
          %408 = vst [vmem:[%s282] sm:$0xff] %v407
        $region40: #{tpu_custom_call.1} parent=35 // pred_fallthru
          _
        %s409 = sand.u32 %s161, 1
        %s410 = scalar_lea.sflag [#allocation3], %s409
        %s411 = sand.u32 %s161, 1
        %s412 = smul.addr %s411, 8
        %s413 = scalar_lea.vmem [#allocation2], %s412
        // Predicated region
        $region41: #{tpu_custom_call.1} parent=35 // pred_check
          %p414 = pneg %p171
        $region42: #{tpu_custom_call.1} parent=35 // pred_check_branch
          %416 = sbr.rel (%p414) target = $region44
        $region43: #{tpu_custom_call.1} parent=35 // pred_region
          %418 = vsyncadd %s410, 0
          %s419 = sadd.s32 %s25, %s24
          %s420 = sadd.s32 %s419, %s23
          %s421 = smul.addr %s420, 8
          %s422 = scalar_lea.hbm %s4, %s421
          %s424 = sshll.u32 %s413, 4
          %s425 = int_to_ptr.vmem [resolvable:$true] %s424
          %s426 = sshll.u32 %s422, 4
          %s427 = int_to_ptr.hbm [resolvable:$true] %s426
          %429 = dma.vmem_to_hbm [thread:$0]  %s425, 128, %s427, %s410
        $region44: #{tpu_custom_call.1} parent=35 // pred_fallthru
          _
      $region36: #{tpu_custom_call.1} parent=5 // pred_fallthru
        _
      %p430 = scmp.le.s32.totalorder 2, %s13
      // Predicated region
      $region45: #{tpu_custom_call.1} parent=5 // pred_check
        %p431 = pneg %p430
      $region46: #{tpu_custom_call.1} parent=5 // pred_check_branch
        %433 = sbr.rel (%p431) target = $region48
      $region47: #{tpu_custom_call.1} parent=5 // pred_region
        %s434 = ssub.s32 %s13, 2
        // Predicated region
        $region49: #{tpu_custom_call.1} parent=47 // pred_check
          %p435 = pneg %p177
        $region50: #{tpu_custom_call.1} parent=47 // pred_check_branch
          %437 = sbr.rel (%p435) target = $region52
        $region51: #{tpu_custom_call.1} parent=47 // pred_region
          %s438 = sand.u32 %s162, 1
          %s439 = scalar_lea.sflag [#allocation3], %s438
          %s440 = sand.u32 %s162, 1
          %s441 = smul.addr %s440, 8
          %s442 = scalar_lea.vmem [#allocation2], %s441
          %444 = dma.done %s439, 128
        $region52: #{tpu_custom_call.1} parent=47 // pred_fallthru
          _
      $region48: #{tpu_custom_call.1} parent=5 // pred_fallthru
        _
    $region6: #{tpu_custom_call.1} parent=1 // loop_footer
      %s17 = sadd.s32 1, %s13
    $region7: #{tpu_custom_call.1} parent=1 // loop_footer_branch
      %12 = sbr.rel target = $region3
    $region8: #{tpu_custom_call.1} parent=1 // loop_exit
      _
    %445 = vsyncpa [#allocation3], 1
    %s446 = scalar_lea.sflag [#allocation3], 1
    %447 = vsyncpa %s446, 1

</llo_original>
